<compile_context>
chip_gen: v7x
topology: tpu7x:2x2x1
jax: 0.10.0
libtpu: 0.0.40
codegen_flags: <defaults>
</compile_context>

<pallas_src>
import functools

import numpy as np
import jax
import jax.numpy as jnp
from jax.experimental import pallas as pl
from jax.experimental.pallas import tpu as pltpu


# ---------------------------------------------------------------------------
# Kernels
# ---------------------------------------------------------------------------

def _cheby2_fused_kernel(x_ref, c_ref, o_ref, *, degree: int, k_pad: int):
    """Small-input_dim path: build [U_0 | U_1 | ... | U_deg | 0-pad] of shape (tm, k_pad) in
    bf16 and do ONE MXU matmul against the host-reshaped (k_pad, tn) coefficient block."""
    x = jnp.tanh(x_ref[...].astype(jnp.float32))
    tm, input_dim = x.shape

    # U_0 = 1, U_1 = 2x, U_d = 2x*U_{d-1} - U_{d-2}.  Recurrence in f32; each feature is cast
    # to bf16 as it is produced so no (tm, K) f32 temporary is materialized.
    u_prev = jnp.ones_like(x)                                   # U_0
    feats = [u_prev.astype(jnp.bfloat16)]
    if degree > 0:
        u_cur = 2.0 * x                                         # U_1
        feats.append(u_cur.astype(jnp.bfloat16))
        for _ in range(2, degree + 1):
            u_prev, u_cur = u_cur, 2.0 * x * u_cur - u_prev
            feats.append(u_cur.astype(jnp.bfloat16))

    k = (degree + 1) * input_dim
    if k_pad > k:  # lane-align K; the matching coefficient rows are zero on the host side
        feats.append(jnp.zeros((tm, k_pad - k), dtype=jnp.bfloat16))

    u = jnp.concatenate(feats, axis=1)                          # (tm, k_pad) bf16
    o_ref[...] = jnp.dot(u, c_ref[...],
                         preferred_element_type=jnp.float32).astype(o_ref.dtype)


def _cheby2_stream_kernel(x_ref, c_ref, o_ref, *, degree: int):
    """Large-input_dim path (degree streaming): never build the (tm, K) operand.
    c_ref: (degree+1, input_dim, tn) bf16; accumulate acc += U_d @ C_d in f32 with only
    U_{d-1}, U_{d-2} kept live.  Each per-degree matmul already has K = input_dim >= 256."""
    x = jnp.tanh(x_ref[...].astype(jnp.float32))

    u_prev = jnp.ones_like(x)                                   # U_0
    acc = jnp.dot(u_prev.astype(jnp.bfloat16), c_ref[0],
                  preferred_element_type=jnp.float32)
    if degree > 0:
        u_cur = 2.0 * x                                         # U_1
        acc += jnp.dot(u_cur.astype(jnp.bfloat16), c_ref[1],
                       preferred_element_type=jnp.float32)
        for d in range(2, degree + 1):
            u_prev, u_cur = u_cur, 2.0 * x * u_cur - u_prev
            acc += jnp.dot(u_cur.astype(jnp.bfloat16), c_ref[d],
                           preferred_element_type=jnp.float32)
    o_ref[...] = acc.astype(o_ref.dtype)


# ---------------------------------------------------------------------------
# Host-side tiling helpers
# ---------------------------------------------------------------------------

def _round_up(v: int, m: int) -> int:
    return (v + m - 1) // m * m


def _pick_tm(B: int, tm_req: int) -> int:
    # Multiple of 8; prefer >= 2 grid steps along batch (v7x has 2 TensorCores per chip).
    half = _round_up(max(1, (B + 1) // 2), 8)
    return max(8, min(tm_req, half))


def _pick_tn(Np: int, tn_req: int) -> int:
    # Np is a multiple of 128; pick the largest multiple-of-128 tile <= tn_req dividing Np.
    if Np <= tn_req:
        return Np
    tn = max(128, (tn_req // 128) * 128)
    while tn > 128 and Np % tn:
        tn -= 128
    return tn


# ---------------------------------------------------------------------------
# Forward wrapper
# ---------------------------------------------------------------------------

def cheby2_kan_forward(x, coeffs, *, tm: int = 256):
    """x: any shape with prod(shape) % input_dim == 0.
    coeffs: (input_dim, output_dim, degree+1) -- same layout as the PyTorch Parameter."""
    input_dim, output_dim, deg_p1 = coeffs.shape
    degree = deg_p1 - 1
    K = deg_p1 * input_dim

    # Reshape only; keep original dtype (kernel upcasts after load -> half batch DMA for bf16).
    x2d = jnp.reshape(x, (-1, input_dim))
    B = x2d.shape[0]
    xb = x2d.dtype.itemsize
    out_dtype = x2d.dtype if jnp.issubdtype(x2d.dtype, jnp.floating) else jnp.float32
    ob = np.dtype(out_dtype).itemsize

    # Lane-dense paddings (full-width stores, unmasked MXU K pass).
    Np = _round_up(output_dim, 128)
    k_pad = _round_up(K, 128)

    # Path selection (static): stream over degrees when input_dim is large enough that each
    # per-degree matmul is already a full MXU K pass; avoids the (tm, K) operand on v7x.
    stream = input_dim >= 256
    kw_rows = deg_p1 * input_dim if stream else k_pad
    w_total = kw_rows * Np * 2                                   # padded bf16 weight bytes

    # ---- Tile sizes under a conservative cross-generation VMEM working-set budget. ----
    tm = _pick_tm(B, tm)
    tn = Np if w_total <= (8 << 20) else _pick_tn(Np, 512)       # resident weight when small

    BUDGET = 26 << 20   # ~v7x scoped default (32 MiB) minus headroom; fine on v5e/v6e too

    def est(tm_, tn_):
        # Double-buffered streams + in-kernel temporaries.
        if stream:
            io = 2 * tm_ * input_dim * xb + 2 * deg_p1 * input_dim * tn_ * 2 + 2 * tm_ * tn_ * ob
            tmp = 3 * tm_ * input_dim * 4 + tm_ * input_dim * 2 + tm_ * tn_ * 4
        else:
            io = 2 * tm_ * input_dim * xb + 2 * k_pad * tn_ * 2 + 2 * tm_ * tn_ * ob
            tmp = 3 * tm_ * input_dim * 4 + tm_ * k_pad * 2 + tm_ * tn_ * 4
        return io + tmp

    while est(tm, tn) > BUDGET and tm > 64:
        tm = max(64, _round_up(tm // 2, 8))
    while est(tm, tn) > BUDGET and tn > 128:
        tn = _pick_tn(Np, tn // 2)

    Bp = _round_up(B, tm)
    ni, nj = Bp // tm, Np // tn

    # ---- Host-side operand prep (zero padding; bf16 MXU operands). ----
    if Bp != B:
        x2d = jnp.pad(x2d, ((0, Bp - B), (0, 0)))
    if stream:
        c_arr = jnp.transpose(coeffs, (2, 0, 1))                 # (deg_p1, in, out)
        c_arr = jnp.pad(c_arr, ((0, 0), (0, 0), (0, Np - output_dim))).astype(jnp.bfloat16)
    else:
        c_arr = jnp.transpose(coeffs, (2, 0, 1)).reshape(K, output_dim)
        c_arr = jnp.pad(c_arr, ((0, k_pad - K), (0, Np - output_dim))).astype(jnp.bfloat16)

    # ---- Grid order: keep the operand with the larger re-stream cost resident in VMEM. ----
    x_total = Bp * input_dim * xb
    reads_batch_outer = x_total + (ni if nj > 1 else 1) * w_total   # weights re-read per i tile
    reads_batch_inner = w_total + (nj if ni > 1 else 1) * x_total   # x re-read per j tile
    batch_inner = reads_batch_inner < reads_batch_outer

    if batch_inner:
        grid = (nj, ni)
        x_map = lambda j, i: (i, 0)
        o_map = lambda j, i: (i, j)
        w_map = (lambda j, i: (0, 0, j)) if stream else (lambda j, i: (0, j))
    else:
        grid = (ni, nj)
        x_map = lambda i, j: (i, 0)
        o_map = lambda i, j: (i, j)
        w_map = (lambda i, j: (0, 0, j)) if stream else (lambda i, j: (0, j))

    if stream:
        w_spec = pl.BlockSpec((deg_p1, input_dim, tn), w_map)
        kernel = functools.partial(_cheby2_stream_kernel, degree=degree)
    else:
        w_spec = pl.BlockSpec((k_pad, tn), w_map)
        kernel = functools.partial(_cheby2_fused_kernel, degree=degree, k_pad=k_pad)

    # Always set the scoped-VMEM limit (v5e default is only 16 MiB); clamp well below the
    # v7x 64 MiB physical VMEM.
    vmem_est = est(tm, tn)
    vmem_limit = int(min(max(int(vmem_est * 1.5) + (8 << 20), 32 << 20), 48 << 20))

    cost = pl.CostEstimate(
        flops=int(2 * Bp * K * Np),
        transcendentals=int(Bp * input_dim),
        bytes_accessed=int(min(reads_batch_inner, reads_batch_outer) + Bp * Np * ob),
    )

    out = pl.pallas_call(
        kernel,
        out_shape=jax.ShapeDtypeStruct((Bp, Np), out_dtype),
        grid=grid,
        in_specs=[pl.BlockSpec((tm, input_dim), x_map), w_spec],
        out_specs=pl.BlockSpec((tm, tn), o_map),
        compiler_params=pltpu.CompilerParams(
            dimension_semantics=("parallel", "parallel"),
            vmem_limit_bytes=vmem_limit,
        ),
        cost_estimate=cost,
    )(x2d, c_arr)

    return out[:B, :output_dim]


# ---------------------------------------------------------------------------
# Pure-JAX reference matching the PyTorch forward
# ---------------------------------------------------------------------------

def cheby2_kan_reference(x, coeffs):
    input_dim, output_dim, deg_p1 = coeffs.shape
    degree = deg_p1 - 1
    xb = jnp.tanh(jnp.reshape(x, (-1, input_dim)).astype(jnp.float32))
    us = [jnp.ones_like(xb)]
    if degree > 0:
        us.append(2.0 * xb)
    for _ in range(2, degree + 1):
        us.append(2.0 * xb * us[-1] - us[-2])
    cheb = jnp.stack(us, axis=-1)  # (B, input_dim, degree+1)
    return jnp.einsum('bid,iod->bo', cheb, coeffs.astype(jnp.float32))


if __name__ == "__main__":
    key = jax.random.PRNGKey(0)
    k1, k2, k3, k4 = jax.random.split(key, 4)

    # --- Test 1: small dims (fused single-matmul path; output_dim 32 -> padded 128) ---
    input_dim, output_dim, degree = 16, 32, 4
    x = jax.random.normal(k1, (2, 4, 16, 16), dtype=jnp.float32)
    std = 1.0 / (input_dim * (degree + 1))
    coeffs = std * jax.random.normal(k2, (input_dim, output_dim, degree + 1),
                                     dtype=jnp.float32)

    y = jax.block_until_ready(cheby2_kan_forward(x, coeffs))
    y_ref = cheby2_kan_reference(x, coeffs)
    assert y.shape == (2 * 4 * 16 * 16 // input_dim, output_dim)
    # bf16 matmul operands (f32 accumulation) -> relaxed tolerance vs f32 reference.
    assert jnp.allclose(y, y_ref, atol=1e-2, rtol=2e-2), float(jnp.max(jnp.abs(y - y_ref)))

    # --- Test 2: larger input_dim exercises the degree-streaming path + output padding ---
    input_dim2, output_dim2, degree2 = 256, 200, 3
    x2 = jax.random.normal(k3, (8, 16, input_dim2), dtype=jnp.float32)
    std2 = 1.0 / (input_dim2 * (degree2 + 1))
    coeffs2 = std2 * jax.random.normal(k4, (input_dim2, output_dim2, degree2 + 1),
                                       dtype=jnp.float32)

    y2 = jax.block_until_ready(cheby2_kan_forward(x2, coeffs2))
    y2_ref = cheby2_kan_reference(x2, coeffs2)
    assert y2.shape == (8 * 16, output_dim2)
    assert jnp.allclose(y2, y2_ref, atol=5e-3, rtol=5e-2), float(jnp.max(jnp.abs(y2 - y2_ref)))

    print("KERNEL_OK")
</pallas_src>

<mosaic_0001>
module attributes {stable_mosaic.version = 11 : i64} {
  func.func @_cheby2_fused_kernel(%arg0: i32, %arg1: i32, %arg2: memref<64x16xf32, #tpu.memory_space<vmem>>, %arg3: memref<128x128xbf16, #tpu.memory_space<vmem>>, %arg4: memref<64x128xf32, #tpu.memory_space<vmem>>) attributes {dimension_semantics = [#tpu.dimension_semantics<parallel>, #tpu.dimension_semantics<parallel>], iteration_bounds = array<i64: 2, 1>, scalar_prefetch = 0 : i64, scratch_operands = 0 : i64, tpu.core_type = #tpu.core_type<tc>, window_params = [{transform_indices = @transform_0, window_bounds = array<i64: 64, 16>}, {transform_indices = @transform_1, window_bounds = array<i64: 128, 128>}, {transform_indices = @transform_2, window_bounds = array<i64: 64, 128>}]} {
    %c0 = arith.constant 0 : index
    %c0_0 = arith.constant 0 : index
    %0 = vector.load %arg2[%c0, %c0_0] : memref<64x16xf32, #tpu.memory_space<vmem>>, vector<64x16xf32>
    %1 = math.tanh %0 : vector<64x16xf32>
    %cst = arith.constant 1.000000e+00 : f32
    %2 = vector.broadcast %cst : f32 to vector<64x16xf32>
    %3 = arith.truncf %2 : vector<64x16xf32> to vector<64x16xbf16>
    %cst_1 = arith.constant 2.000000e+00 : f32
    %4 = vector.broadcast %cst_1 : f32 to vector<64x16xf32>
    %5 = arith.mulf %4, %1 : vector<64x16xf32>
    %6 = arith.truncf %5 : vector<64x16xf32> to vector<64x16xbf16>
    %cst_2 = arith.constant 2.000000e+00 : f32
    %7 = vector.broadcast %cst_2 : f32 to vector<64x16xf32>
    %8 = arith.mulf %7, %1 : vector<64x16xf32>
    %9 = arith.mulf %8, %5 : vector<64x16xf32>
    %10 = arith.subf %9, %2 : vector<64x16xf32>
    %11 = arith.truncf %10 : vector<64x16xf32> to vector<64x16xbf16>
    %cst_3 = arith.constant 2.000000e+00 : f32
    %12 = vector.broadcast %cst_3 : f32 to vector<64x16xf32>
    %13 = arith.mulf %12, %1 : vector<64x16xf32>
    %14 = arith.mulf %13, %10 : vector<64x16xf32>
    %15 = arith.subf %14, %5 : vector<64x16xf32>
    %16 = arith.truncf %15 : vector<64x16xf32> to vector<64x16xbf16>
    %cst_4 = arith.constant 2.000000e+00 : f32
    %17 = vector.broadcast %cst_4 : f32 to vector<64x16xf32>
    %18 = arith.mulf %17, %1 : vector<64x16xf32>
    %19 = arith.mulf %18, %15 : vector<64x16xf32>
    %20 = arith.subf %19, %10 : vector<64x16xf32>
    %21 = arith.truncf %20 : vector<64x16xf32> to vector<64x16xbf16>
    %cst_5 = arith.constant 0.000000e+00 : bf16
    %22 = vector.broadcast %cst_5 : bf16 to vector<64x48xbf16>
    %23 = tpu.concatenate %3, %6, %11, %16, %21, %22 in 1 : vector<64x16xbf16>, vector<64x16xbf16>, vector<64x16xbf16>, vector<64x16xbf16>, vector<64x16xbf16>, vector<64x48xbf16> -> vector<64x128xbf16>
    %c0_6 = arith.constant 0 : index
    %c0_7 = arith.constant 0 : index
    %24 = vector.load %arg3[%c0_6, %c0_7] : memref<128x128xbf16, #tpu.memory_space<vmem>>, vector<128x128xbf16>
    %cst_8 = arith.constant dense<0.000000e+00> : vector<64x128xf32>
    %25 = tpu.matmul %23, %24, %cst_8 {dimension_numbers = #tpu.dot_dimension_numbers<[1], [0], [0], [1], [0, 0, 1, 1], [], []>} : vector<64x128xbf16>, vector<128x128xbf16>, vector<64x128xf32> -> vector<64x128xf32>
    %c0_9 = arith.constant 0 : index
    %c0_10 = arith.constant 0 : index
    %26 = vector.load %arg4[%c0_9, %c0_10] : memref<64x128xf32, #tpu.memory_space<vmem>>, vector<64x128xf32>
    tpu.vector_store %arg4[%c0_9, %c0_10], %25 {strides = array<i32>} : memref<64x128xf32, #tpu.memory_space<vmem>>, vector<64x128xf32>,
    return
  }
  func.func @transform_0(%arg0: i32, %arg1: i32) -> (i32, i32) {
    %c0_i32 = arith.constant 0 : i32
    %c0_i32_0 = arith.constant 0 : i32
    return %arg0, %c0_i32 : i32, i32
  }
  func.func @transform_1(%arg0: i32, %arg1: i32) -> (i32, i32) {
    %c0_i32 = arith.constant 0 : i32
    %c0_i32_0 = arith.constant 0 : i32
    return %c0_i32, %arg1 : i32, i32
  }
  func.func @transform_2(%arg0: i32, %arg1: i32) -> (i32, i32) {
    %c0_i32 = arith.constant 0 : i32
    return %arg0, %arg1 : i32, i32
  }
}

</mosaic_0001>

<llo_original>
// kernel: tpu_custom_call.1
$region0: #{tpu_custom_call.1}
  #allocation0 [shape = 'u32[]', space=smem, size = 0x4, offset = 0x4, fixed_abs, tag = 'smem constant byte address 0x4 - core index']
  #allocation1 [shape = 'u32[144,128]{1,0:T(1,128)}', space=vmem, size = 0x12000, scoped, tag = 'internal scratch']
  %s0 = inlined_call_operand.vmem [shape: f32[128,16], index: 0, kind: input, shape index: {}]
  %s1 = inlined_call_operand.vmem [shape: bf16[128,128], index: 1, kind: input, shape index: {}]
  %s2 = inlined_call_operand.hbm [shape: f32[128,128], index: 2, kind: output, shape index: {}]
  %s3 = sld [smem:[#allocation0]]
  $region41: #{tpu_custom_call.1} parent=0
    _
  %s5 = ssub.s32 1, %s3
  %s6 = scalar_select 0, %s5, %s3
  $region1: #{tpu_custom_call.1} parent=0
    #allocation2 [shape = 'u8[65536]{0}', space=vmem, size = 0x10000, scoped, tag = 'output window, operand 0']
    #allocation3 [shape = 's32[2]{0}', space=sflag, size = 0x8, scoped, tag = 'scoped memory for tpu_custom_call.1']
    %7 = vsyncpa [#allocation3], 0
    %s8 = scalar_lea.sflag [#allocation3], 1
    %9 = vsyncpa %s8, 0
    loop: start=0, step=1, limit=4
    $region2: #{tpu_custom_call.1} parent=1 // loop_pre_header
      _
    $region3: #{tpu_custom_call.1} parent=1 // loop_header
      %s11 = sphi 0, %s15
      %p12 = scmp.ge.s32.totalorder %s11, 4
      %s18 = sphi 0, %s30
      %s19 = sphi 0, %s26
      %s20 = sphi 0, %s18
      %s21 = sphi 0, %s19
      %s22 = sphi 0, %s20
      %s23 = sphi 0, %s21
      %s33 = sphi 0, %s35
      %s36 = sphi 0, %s33
      %s37 = sphi 0, %s36
      %s53 = sphi 0, %s37
      %s59 = sphi 0, %s61
      %s62 = sphi 0, %s59
      %s63 = sphi 0, %s62
      %s79 = sphi 0, %s63
      %s87 = sphi 0, %s89
      %s90 = sphi 0, %s87
      %s91 = sphi 0, %s90
      %s107 = sphi 0, %s91
    $region4: #{tpu_custom_call.1} parent=1 // loop_header_branch
      %14 = sbr.rel (%p12) target = $region8
    $region5: #{tpu_custom_call.1} parent=1 // loop_body
      %s16 = ssub.s32 %s11, 1
      %s17 = ssub.s32 %s11, 2
      %s24 = sadd.s32 1, %s19
      %p25 = scmp.ge.s32.totalorder %s24, 1
      %s26 = scalar_select %p25, 0, %s24
      %s27 = sadd.s32 1, %s18
      %s28 = scalar_select %p25, %s27, %s18
      %p29 = scmp.ge.s32.totalorder %s28, 2
      %s30 = scalar_select %p29, 0, %s28
      %s31 = ssub.s32 %s18, %s30
      %p32 = scmp.eq.s32.totalorder %s31, 0
      %s34 = sadd.s32 %s33, 1
      %s35 = scalar_select %p32, %s33, %s34
      %p38 = pneg %p32
      %p39 = scmp.eq.s32.totalorder %s11, 1
      %p40 = por %p38, %p39
      %p41 = scmp.ne.s32.totalorder %s33, %s36
      %p42 = scmp.eq.s32.totalorder %s11, 0
      %p43 = por %p41, %p42
      %p44 = scmp.ne.s32.totalorder %s33, %s36
      %p45 = scmp.eq.s32.totalorder %s16, 1
      %p46 = por %p44, %p45
      %p47 = scmp.ne.s32.totalorder %s36, %s37
      %p48 = scmp.eq.s32.totalorder %s16, 0
      %p49 = por %p47, %p48
      %p50 = scmp.ne.s32.totalorder %s36, %s37
      %p51 = scmp.eq.s32.totalorder %s17, 1
      %p52 = por %p50, %p51
      %p54 = scmp.ne.s32.totalorder %s37, %s53
      %p55 = scmp.eq.s32.totalorder %s17, 0
      %p56 = por %p54, %p55
      %s57 = ssub.s32 %s19, %s26
      %p58 = scmp.eq.s32.totalorder %s57, 0
      %s60 = sadd.s32 %s59, 1
      %s61 = scalar_select %p58, %s59, %s60
      %p64 = pneg %p58
      %p65 = scmp.eq.s32.totalorder %s11, 1
      %p66 = por %p64, %p65
      %p67 = scmp.ne.s32.totalorder %s59, %s62
      %p68 = scmp.eq.s32.totalorder %s11, 0
      %p69 = por %p67, %p68
      %p70 = scmp.ne.s32.totalorder %s59, %s62
      %p71 = scmp.eq.s32.totalorder %s16, 1
      %p72 = por %p70, %p71
      %p73 = scmp.ne.s32.totalorder %s62, %s63
      %p74 = scmp.eq.s32.totalorder %s16, 0
      %p75 = por %p73, %p74
      %p76 = scmp.ne.s32.totalorder %s62, %s63
      %p77 = scmp.eq.s32.totalorder %s17, 1
      %p78 = por %p76, %p77
      %p80 = scmp.ne.s32.totalorder %s63, %s79
      %p81 = scmp.eq.s32.totalorder %s17, 0
      %p82 = por %p80, %p81
      %s83 = ssub.s32 %s18, %s30
      %s84 = ssub.s32 %s19, %s26
      %s85 = sor.u32 %s83, %s84
      %p86 = scmp.eq.s32.totalorder %s85, 0
      %s88 = sadd.s32 %s87, 1
      %s89 = scalar_select %p86, %s87, %s88
      %p92 = pneg %p86
      %p93 = scmp.eq.s32.totalorder %s11, 1
      %p94 = por %p92, %p93
      %p95 = scmp.ne.s32.totalorder %s87, %s90
      %p96 = scmp.eq.s32.totalorder %s11, 0
      %p97 = por %p95, %p96
      %p98 = scmp.ne.s32.totalorder %s87, %s90
      %p99 = scmp.eq.s32.totalorder %s16, 1
      %p100 = por %p98, %p99
      %p101 = scmp.ne.s32.totalorder %s90, %s91
      %p102 = scmp.eq.s32.totalorder %s16, 0
      %p103 = por %p101, %p102
      %p104 = scmp.ne.s32.totalorder %s90, %s91
      %p105 = scmp.eq.s32.totalorder %s17, 1
      %p106 = por %p104, %p105
      %p108 = scmp.ne.s32.totalorder %s91, %s107
      %p109 = scmp.eq.s32.totalorder %s17, 0
      %p110 = por %p108, %p109
      %p111 = scmp.le.s32.totalorder 1, %s11
      %p112 = scmp.lt.s32.totalorder %s11, 3
      %p113 = pnand %p111, %p112
      %p114 = pneg %p113
      // Predicated region
      $region9: #{tpu_custom_call.1} parent=5 // pred_check
        _
      $region10: #{tpu_custom_call.1} parent=5 // pred_check_branch
        %116 = sbr.rel (%p113) target = $region12
      $region11: #{tpu_custom_call.1} parent=5 // pred_region
        %s117 = ssub.s32 %s11, 1
        // Predicated region
        $region13: #{tpu_custom_call.1} parent=11 // pred_check
          %p118 = pneg %p75
        $region14: #{tpu_custom_call.1} parent=11 // pred_check_branch
          %120 = sbr.rel (%p118) target = $region16
        $region15: #{tpu_custom_call.1} parent=11 // pred_region
          %p121 = scmp.lt.s32.totalorder %s21, 0
          %s122 = scalar_select %p121, %s21, 0
          %s123 = smul.addr %s122, 4
          %s124 = scalar_lea.vmem %s1, %s123
        $region16: #{tpu_custom_call.1} parent=11 // pred_fallthru
          _
      $region12: #{tpu_custom_call.1} parent=5 // pred_fallthru
        _
      %p125 = scmp.lt.s32.totalorder %s11, 2
      // Predicated region
      $region17: #{tpu_custom_call.1} parent=5 // pred_check
        %p126 = pneg %p125
      $region18: #{tpu_custom_call.1} parent=5 // pred_check_branch
        %128 = sbr.rel (%p126) target = $region20
      $region19: #{tpu_custom_call.1} parent=5 // pred_region
        // Predicated region
        $region21: #{tpu_custom_call.1} parent=19 // pred_check
          %p129 = pneg %p43
        $region22: #{tpu_custom_call.1} parent=19 // pred_check_branch
          %131 = sbr.rel (%p129) target = $region24
        $region23: #{tpu_custom_call.1} parent=19 // pred_region
          %s132 = smul.u32 8, %s18
          %p133 = scmp.lt.s32.totalorder %s132, 15
          %s134 = scalar_select %p133, %s132, 15
          %s135 = smul.addr %s134, 8
          %s136 = scalar_lea.vmem %s0, %s135
          %s137 = smul.u32 8, %s18
        $region24: #{tpu_custom_call.1} parent=19 // pred_fallthru
          _
      $region20: #{tpu_custom_call.1} parent=5 // pred_fallthru
        _
      %p138 = scmp.le.s32.totalorder 1, %s11
      %p139 = scmp.lt.s32.totalorder %s11, 3
      %p140 = pnand %p138, %p139
      %p141 = pneg %p140
      // Predicated region
      $region25: #{tpu_custom_call.1} parent=5 // pred_check
        _
      $region26: #{tpu_custom_call.1} parent=5 // pred_check_branch
        %143 = sbr.rel (%p140) target = $region28
      $region27: #{tpu_custom_call.1} parent=5 // pred_region
        %s144 = ssub.s32 %s11, 1
        %s145 = smul.u32 8, %s20
        %p146 = scmp.lt.s32.totalorder %s145, 15
        %s147 = scalar_select %p146, %s145, 15
        %s148 = smul.addr %s147, 8
        %s149 = scalar_lea.vmem %s0, %s148
        %p150 = pneg %p49
        %p151 = pneg %p46
        %p152 = scmp.lt.s32.totalorder %s21, 0
        %s153 = scalar_select %p152, %s21, 0
        %s154 = smul.addr %s153, 4
        %s155 = scalar_lea.vmem %s1, %s154
        %p156 = pneg %p75
        %p157 = pneg %p72
        %p158 = pneg %p103
        %p159 = pneg %p100
        %s160 = sand.u32 %s90, 1
        %s161 = scalar_lea.sflag [#allocation3], %s160
        %s162 = sand.u32 %s90, 1
        %s163 = smul.addr %s162, 64
        %s164 = scalar_lea.vmem [#allocation2], %s163
        %s165 = smul.u32 8, %s20
        %p166 = scmp.lt.s32.totalorder %s165, 15
        %s167 = scalar_select %p166, %s165, 15
        %s168 = smul.addr %s167, 8
        %s169 = scalar_lea.vmem %s0, %s168
        %s170 = smul.u32 8, %s20
        %p171 = scmp.lt.s32.totalorder %s21, 0
        %s172 = scalar_select %p171, %s21, 0
        %s173 = smul.addr %s172, 4
        %s174 = scalar_lea.vmem %s1, %s173
        %s175 = smul.u32 8, %s20
        %v178 = vld [vmem:[%s169] sm:$0xff]
        %v179 = vld [vmem:[%s169 + $0x8] sm:$0xff]
        %v180 = vld [vmem:[%s169 + $0x10] sm:$0xff]
        %v181 = vld [vmem:[%s169 + $0x18] sm:$0xff]
        %v182 = vld [vmem:[%s169 + $0x20] sm:$0xff]
        %v183 = vld [vmem:[%s169 + $0x28] sm:$0xff]
        %v184 = vld [vmem:[%s169 + $0x30] sm:$0xff]
        %v185 = vld [vmem:[%s169 + $0x38] sm:$0xff]
        %v186 = vtanh.pop %v178
        %v187 = vtanh.pop %v179
        %v188 = vtanh.pop %v180
        %v189 = vtanh.pop %v181
        %v190 = vtanh.pop %v182
        %v191 = vtanh.pop %v183
        %v192 = vtanh.pop %v184
        %v193 = vtanh.pop %v185
        %v194 = vmul.f32 %v186, 2.0
        %v195 = vmul.f32 %v187, 2.0
        %v196 = vmul.f32 %v188, 2.0
        %v197 = vmul.f32 %v189, 2.0
        %v198 = vmul.f32 %v190, 2.0
        %v199 = vmul.f32 %v191, 2.0
        %v200 = vmul.f32 %v192, 2.0
        %v201 = vmul.f32 %v193, 2.0
        %v202 = vpack.c.bf16 %v195, %v194
        %v203 = vpack.c.bf16 %v197, %v196
        %v204 = vpack.c.bf16 %v199, %v198
        %v205 = vpack.c.bf16 %v201, %v200
        %v206 = vmul.f32 %v194, %v194
        %v207 = vmul.f32 %v195, %v195
        %v208 = vmul.f32 %v196, %v196
        %v209 = vmul.f32 %v197, %v197
        %v210 = vmul.f32 %v198, %v198
        %v211 = vmul.f32 %v199, %v199
        %v212 = vmul.f32 %v200, %v200
        %v213 = vmul.f32 %v201, %v201
        %v214 = vsub.f32 %v206, 1.0
        %v215 = vsub.f32 %v207, 1.0
        %v216 = vsub.f32 %v208, 1.0
        %v217 = vsub.f32 %v209, 1.0
        %v218 = vsub.f32 %v210, 1.0
        %v219 = vsub.f32 %v211, 1.0
        %v220 = vsub.f32 %v212, 1.0
        %v221 = vsub.f32 %v213, 1.0
        %v222 = vpack.c.bf16 %v215, %v214
        %v223 = vpack.c.bf16 %v217, %v216
        %v224 = vpack.c.bf16 %v219, %v218
        %v225 = vpack.c.bf16 %v221, %v220
        %v226 = vmul.f32 %v194, %v214
        %v227 = vmul.f32 %v195, %v215
        %v228 = vmul.f32 %v196, %v216
        %v229 = vmul.f32 %v197, %v217
        %v230 = vmul.f32 %v198, %v218
        %v231 = vmul.f32 %v199, %v219
        %v232 = vmul.f32 %v200, %v220
        %v233 = vmul.f32 %v201, %v221
        %v234 = vsub.f32 %v226, %v194
        %v235 = vsub.f32 %v227, %v195
        %v236 = vsub.f32 %v228, %v196
        %v237 = vsub.f32 %v229, %v197
        %v238 = vsub.f32 %v230, %v198
        %v239 = vsub.f32 %v231, %v199
        %v240 = vsub.f32 %v232, %v200
        %v241 = vsub.f32 %v233, %v201
        %v242 = vpack.c.bf16 %v235, %v234
        %v243 = vpack.c.bf16 %v237, %v236
        %v244 = vpack.c.bf16 %v239, %v238
        %v245 = vpack.c.bf16 %v241, %v240
        %v246 = vmul.f32 %v194, %v234
        %v247 = vmul.f32 %v195, %v235
        %v248 = vmul.f32 %v196, %v236
        %v249 = vmul.f32 %v197, %v237
        %v250 = vmul.f32 %v198, %v238
        %v251 = vmul.f32 %v199, %v239
        %v252 = vmul.f32 %v200, %v240
        %v253 = vmul.f32 %v201, %v241
        %v254 = vsub.f32 %v246, %v214
        %v255 = vsub.f32 %v247, %v215
        %v256 = vsub.f32 %v248, %v216
        %v257 = vsub.f32 %v249, %v217
        %v258 = vsub.f32 %v250, %v218
        %v259 = vsub.f32 %v251, %v219
        %v260 = vsub.f32 %v252, %v220
        %v261 = vsub.f32 %v253, %v221
        %v262 = vpack.c.bf16 %v255, %v254
        %v263 = vpack.c.bf16 %v257, %v256
        %v264 = vpack.c.bf16 %v259, %v258
        %v265 = vpack.c.bf16 %v261, %v260
        %270 = vrot.lane.b32.xlu0 %v202, 16
        %v271 = vpop.permute.xlu0 %270
        %272 = vrot.lane.b32.xlu0 %v203, 16
        %v273 = vpop.permute.xlu0 %272
        %274 = vrot.lane.b32.xlu0 %v204, 16
        %v275 = vpop.permute.xlu0 %274
        %276 = vrot.lane.b32.xlu0 %v205, 16
        %v277 = vpop.permute.xlu0 %276
        %282 = vrot.lane.b32.xlu0 %v222, 32
        %v283 = vpop.permute.xlu0 %282
        %284 = vrot.lane.b32.xlu0 %v223, 32
        %v285 = vpop.permute.xlu0 %284
        %286 = vrot.lane.b32.xlu0 %v224, 32
        %v287 = vpop.permute.xlu0 %286
        %288 = vrot.lane.b32.xlu0 %v225, 32
        %v289 = vpop.permute.xlu0 %288
        %294 = vrot.lane.b32.xlu0 %v242, 48
        %v295 = vpop.permute.xlu0 %294
        %296 = vrot.lane.b32.xlu0 %v243, 48
        %v297 = vpop.permute.xlu0 %296
        %298 = vrot.lane.b32.xlu0 %v244, 48
        %v299 = vpop.permute.xlu0 %298
        %300 = vrot.lane.b32.xlu0 %v245, 48
        %v301 = vpop.permute.xlu0 %300
        %306 = vrot.lane.b32.xlu0 %v262, 64
        %v307 = vpop.permute.xlu0 %306
        %308 = vrot.lane.b32.xlu0 %v263, 64
        %v309 = vpop.permute.xlu0 %308
        %310 = vrot.lane.b32.xlu0 %v264, 64
        %v311 = vpop.permute.xlu0 %310
        %312 = vrot.lane.b32.xlu0 %v265, 64
        %v313 = vpop.permute.xlu0 %312
        %vm314 = vcmask 130048
        %v317 = vsel %vm314, 1065369472, %v271
        %v319 = vsel %vm314, 1065369472, %v273
        %v321 = vsel %vm314, 1065369472, %v275
        %v323 = vsel %vm314, 1065369472, %v277
        %vm324 = vcmask 261120
        %v326 = vsel %vm324, %v317, %v283
        %v328 = vsel %vm324, %v319, %v285
        %v330 = vsel %vm324, %v321, %v287
        %v332 = vsel %vm324, %v323, %v289
        %vm333 = vcmask 392192
        %v335 = vsel %vm333, %v326, %v295
        %v337 = vsel %vm333, %v328, %v297
        %v339 = vsel %vm333, %v330, %v299
        %v341 = vsel %vm333, %v332, %v301
        %vm342 = vcmask 523264
        %v344 = vsel %vm342, %v335, %v307
        %v346 = vsel %vm342, %v337, %v309
        %v348 = vsel %vm342, %v339, %v311
        %v350 = vsel %vm342, %v341, %v313
        %vm351 = vcmask 654336
        %v353 = vsel %vm351, %v344, 0
        %v355 = vsel %vm351, %v346, 0
        %v357 = vsel %vm351, %v348, 0
        %v359 = vsel %vm351, %v350, 0
        %v361 = vld [vmem:[%s174] sm:$0xf]
        %v362 = vld [vmem:[%s174 + $0x4] sm:$0xf]
        %v363 = vld [vmem:[%s174 + $0x8] sm:$0xf]
        %v364 = vld [vmem:[%s174 + $0xc] sm:$0xf]
        %v365 = vld [vmem:[%s174 + $0x10] sm:$0xf]
        %v366 = vld [vmem:[%s174 + $0x14] sm:$0xf]
        %v367 = vld [vmem:[%s174 + $0x18] sm:$0xf]
        %v368 = vld [vmem:[%s174 + $0x1c] sm:$0xf]
        %v369 = vld [vmem:[%s174 + $0x20] sm:$0xf]
        %v370 = vld [vmem:[%s174 + $0x24] sm:$0xf]
        %v371 = vld [vmem:[%s174 + $0x28] sm:$0xf]
        %v372 = vld [vmem:[%s174 + $0x2c] sm:$0xf]
        %v373 = vld [vmem:[%s174 + $0x30] sm:$0xf]
        %v374 = vld [vmem:[%s174 + $0x34] sm:$0xf]
        %v375 = vld [vmem:[%s174 + $0x38] sm:$0xf]
        %v376 = vld [vmem:[%s174 + $0x3c] sm:$0xf]
        %v393 = vunpack.c.l.b16 %v361
        %v394 = vunpack.c.l.b16 %v362
        %v395 = vunpack.c.l.b16 %v363
        %v396 = vunpack.c.l.b16 %v364
        %v397 = vunpack.c.l.b16 %v365
        %v398 = vunpack.c.l.b16 %v366
        %v399 = vunpack.c.l.b16 %v367
        %v400 = vunpack.c.l.b16 %v368
        %v401 = vunpack.c.l.b16 %v369
        %v402 = vunpack.c.l.b16 %v370
        %v403 = vunpack.c.l.b16 %v371
        %v404 = vunpack.c.l.b16 %v372
        %v405 = vunpack.c.l.b16 %v373
        %v406 = vunpack.c.l.b16 %v374
        %v407 = vunpack.c.l.b16 %v375
        %v408 = vunpack.c.l.b16 %v376
        %v409 = vpack.c.b16 %v394, %v393
        %v410 = vpack.c.b16 %v396, %v395
        %v411 = vpack.c.b16 %v398, %v397
        %v412 = vpack.c.b16 %v400, %v399
        %v413 = vpack.c.b16 %v402, %v401
        %v414 = vpack.c.b16 %v404, %v403
        %v415 = vpack.c.b16 %v406, %v405
        %v416 = vpack.c.b16 %v408, %v407
        %425 = vmatprep.subr.bf16.mxu0 0
        %426 = vmatpush1.bf16.msra.mxu0 %v409
        %427 = vmatprep.subr.bf16.mxu0 0
        %428 = vmatpush1.bf16.msra.mxu0 %v410
        %429 = vmatprep.subr.bf16.mxu0 0
        %430 = vmatpush1.bf16.msra.mxu0 %v411
        %431 = vmatprep.subr.bf16.mxu0 0
        %432 = vmatpush1.bf16.msra.mxu0 %v412
        %433 = vmatprep.subr.bf16.mxu0 0
        %434 = vmatpush1.bf16.msra.mxu0 %v413
        %435 = vmatprep.subr.bf16.mxu0 0
        %436 = vmatpush1.bf16.msra.mxu0 %v414
        %437 = vmatprep.subr.bf16.mxu0 0
        %438 = vmatpush1.bf16.msra.mxu0 %v415
        %439 = vmatprep.subr.bf16.mxu0 0
        %440 = vmatpush1.bf16.msra.mxu0 %v416
        %441 = vmatprep.subr.bf16.mxu0 0
        %442 = vmatpush1.bf16.msra.mxu0 0
        %443 = vmatprep.subr.bf16.mxu0 0
        %444 = vmatpush1.bf16.msra.mxu0 0
        %445 = vmatprep.subr.bf16.mxu0 0
        %446 = vmatpush1.bf16.msra.mxu0 0
        %447 = vmatprep.subr.bf16.mxu0 0
        %448 = vmatpush1.bf16.msra.mxu0 0
        %449 = vmatprep.subr.bf16.mxu0 0
        %450 = vmatpush1.bf16.msra.mxu0 0
        %451 = vmatprep.subr.bf16.mxu0 0
        %452 = vmatpush1.bf16.msra.mxu0 0
        %453 = vmatprep.subr.bf16.mxu0 0
        %454 = vmatpush1.bf16.msra.mxu0 0
        %455 = vmatprep.subr.bf16.mxu0 0
        %456 = vmatpush1.bf16.msra.mxu0 0
        %457 = vmatprep.mubr.bf16.mxu0 0
        %458 = vmatmul.mubr.bf16.gmra.mrb[0].mxu0 %v353
        %v459 = vpop.f32.mrb[0].mxu0
        %v460 = vadd.f32 0.0, %v459
        %v461 = vpop.f32.mrb[0].mxu0
        %v462 = vpop.f32.mrb[0].mxu0
        %v463 = vadd.f32 0.0, %v462
        %v464 = vpop.f32.mrb[0].mxu0
        %465 = vmatprep.mubr.bf16.mxu0 0
        %466 = vmatmul.mubr.bf16.gmra.mrb[0].mxu0 %v355
        %v467 = vpop.f32.mrb[0].mxu0
        %v468 = vadd.f32 0.0, %v467
        %v469 = vpop.f32.mrb[0].mxu0
        %v470 = vpop.f32.mrb[0].mxu0
        %v471 = vadd.f32 0.0, %v470
        %v472 = vpop.f32.mrb[0].mxu0
        %473 = vmatprep.mubr.bf16.mxu0 0
        %474 = vmatmul.mubr.bf16.gmra.mrb[0].mxu0 %v357
        %v475 = vpop.f32.mrb[0].mxu0
        %v476 = vadd.f32 0.0, %v475
        %v477 = vpop.f32.mrb[0].mxu0
        %v478 = vpop.f32.mrb[0].mxu0
        %v479 = vadd.f32 0.0, %v478
        %v480 = vpop.f32.mrb[0].mxu0
        %481 = vmatprep.mubr.bf16.mxu0 0
        %482 = vmatmul.mubr.bf16.gmra.mrb[0].mxu0 %v359
        %v483 = vpop.f32.mrb[0].mxu0
        %v484 = vadd.f32 0.0, %v483
        %v485 = vpop.f32.mrb[0].mxu0
        %v486 = vpop.f32.mrb[0].mxu0
        %v487 = vadd.f32 0.0, %v486
        %v488 = vpop.f32.mrb[0].mxu0
        %489 = vdwg.mxu0
        %490 = vst [vmem:[%s164] sm:$0xff] %v460
        %491 = vst [vmem:[%s164 + $0x8] sm:$0xff] %v463
        %492 = vst [vmem:[%s164 + $0x10] sm:$0xff] %v468
        %493 = vst [vmem:[%s164 + $0x18] sm:$0xff] %v471
        %494 = vst [vmem:[%s164 + $0x20] sm:$0xff] %v476
        %495 = vst [vmem:[%s164 + $0x28] sm:$0xff] %v479
        %496 = vst [vmem:[%s164 + $0x30] sm:$0xff] %v484
        %497 = vst [vmem:[%s164 + $0x38] sm:$0xff] %v487
        %s498 = sand.u32 %s90, 1
        %s499 = scalar_lea.sflag [#allocation3], %s498
        %s500 = sand.u32 %s90, 1
        %s501 = smul.addr %s500, 64
        %s502 = scalar_lea.vmem [#allocation2], %s501
        // Predicated region
        $region29: #{tpu_custom_call.1} parent=27 // pred_check
          %p503 = pneg %p100
        $region30: #{tpu_custom_call.1} parent=27 // pred_check_branch
          %505 = sbr.rel (%p503) target = $region32
        $region31: #{tpu_custom_call.1} parent=27 // pred_region
          %s506 = smul.u32 8, %s20
          %s508 = ssub.s32 1024, 1024
          %509 = vsyncadd %s499, %s508
          %s510 = sadd.s32 %s21, %s506
          %s511 = smul.addr %s510, 128
          %s512 = scalar_lea.hbm %s2, %s511
          %s513 = sshll.u32 %s502, 4
          %s514 = int_to_ptr.vmem [resolvable:$true] %s513
          %519 = dma.vmem_to_hbm [thread:$0]  %s514, 1024, %s512, %s499, 128, 128, 8
        $region32: #{tpu_custom_call.1} parent=27 // pred_fallthru
          _
      $region28: #{tpu_custom_call.1} parent=5 // pred_fallthru
        _
      %p520 = scmp.le.s32.totalorder 2, %s11
      // Predicated region
      $region33: #{tpu_custom_call.1} parent=5 // pred_check
        %p521 = pneg %p520
      $region34: #{tpu_custom_call.1} parent=5 // pred_check_branch
        %523 = sbr.rel (%p521) target = $region36
      $region35: #{tpu_custom_call.1} parent=5 // pred_region
        %s524 = ssub.s32 %s11, 2
        // Predicated region
        $region37: #{tpu_custom_call.1} parent=35 // pred_check
          %p525 = pneg %p106
        $region38: #{tpu_custom_call.1} parent=35 // pred_check_branch
          %527 = sbr.rel (%p525) target = $region40
        $region39: #{tpu_custom_call.1} parent=35 // pred_region
          %s528 = sand.u32 %s91, 1
          %s529 = scalar_lea.sflag [#allocation3], %s528
          %s530 = sand.u32 %s91, 1
          %s531 = smul.addr %s530, 64
          %s532 = scalar_lea.vmem [#allocation2], %s531
          %533 = dma.done %s529, 1024
        $region40: #{tpu_custom_call.1} parent=35 // pred_fallthru
          _
      $region36: #{tpu_custom_call.1} parent=5 // pred_fallthru
        _
    $region6: #{tpu_custom_call.1} parent=1 // loop_footer
      %s15 = sadd.s32 1, %s11
    $region7: #{tpu_custom_call.1} parent=1 // loop_footer_branch
      %10 = sbr.rel target = $region3
    $region8: #{tpu_custom_call.1} parent=1 // loop_exit
      _
    %534 = vsyncpa [#allocation3], 1
    %s535 = scalar_lea.sflag [#allocation3], 1
    %536 = vsyncpa %s535, 1

</llo_original>
